<compile_context>
chip_gen: v7x
topology: tpu7x:2x2x1
jax: 0.10.0
libtpu: 0.0.40
codegen_flags: <defaults>
</compile_context>

<pallas_src>
import functools

import jax
import jax.numpy as jnp
from jax.experimental import pallas as pl
from jax.experimental.pallas import tpu as pltpu


def _round_up(n: int, m: int) -> int:
    return ((n + m - 1) // m) * m


def _classifier_kernel(seed_ref, x_ref, wt_ref, b_ref, o_ref, *,
                       drop_prob: float, training: bool):
    """seed_ref: SMEM (1,) int32 (scalar prefetch);
       x:(TB,H), wt:(H,128), b:(1,128), o:(TB,128) in VMEM."""
    x = x_ref[...].astype(jnp.float32)

    if training and drop_prob > 0.0:
        tb, h = x_ref.shape
        # Global element index (unique across all batch tiles) -> counter-based hash.
        row = jax.lax.broadcasted_iota(jnp.int32, (tb, h), 0).astype(jnp.uint32)
        col = jax.lax.broadcasted_iota(jnp.int32, (tb, h), 1).astype(jnp.uint32)
        blk = pl.program_id(0).astype(jnp.uint32)
        idx = (row + blk * jnp.uint32(tb)) * jnp.uint32(h) + col

        seed_u = seed_ref[0].astype(jnp.uint32)
        z = idx + seed_u * jnp.uint32(0x9E3779B9)
        # murmur3 32-bit finalizer: cheap, well-mixed, VPU-only integer ops.
        z = z ^ (z >> 16)
        z = z * jnp.uint32(0x85EBCA6B)
        z = z ^ (z >> 13)
        z = z * jnp.uint32(0xC2B2AE35)
        z = z ^ (z >> 16)

        # Use the top 24 bits as a uniform integer; compare against an integer
        # threshold (no int->float convert, no float compare).
        bits = (z >> 8).astype(jnp.int32)                      # [0, 2^24)
        thresh = jnp.int32(min(int(round(drop_prob * (1 << 24))), (1 << 24) - 1))
        inv_keep = jnp.float32(1.0 / (1.0 - drop_prob))
        x = jnp.where(bits >= thresh, x * inv_keep, jnp.float32(0.0))

    y = jnp.dot(x, wt_ref[...].astype(jnp.float32),
                preferred_element_type=jnp.float32)
    y = y + b_ref[...].astype(jnp.float32)
    o_ref[...] = y.astype(o_ref.dtype)


@functools.partial(jax.jit, static_argnames=("drop_prob", "training"))
def distilbert_classifier(x, weight, bias, seed, *, drop_prob, training):
    """x: (B, H); weight: (L, H) (PyTorch nn.Linear layout); bias: (L,)."""
    B, H = x.shape
    L = weight.shape[0]
    LP = 128                                  # lane-dense (padded) label dimension

    # Pre-transpose + lane-pad the tiny Linear params (fused into this jit, done once
    # per compiled program rather than per kernel step).
    w_t = jnp.zeros((H, LP), x.dtype).at[:, :L].set(weight.T.astype(x.dtype))
    b2d = jnp.zeros((1, LP), x.dtype).at[:, :L].set(bias.astype(x.dtype))

    # Batch tiling: big tiles amortize the ~0.35us per-step overhead while staying far
    # under v7x's 32 MiB default scoped VMEM (2 x double-buffered f32 (512, H) tiles).
    TB = 512 if B >= 512 else _round_up(B, 8)
    Bp = _round_up(B, TB)
    x_p = jnp.pad(x, ((0, Bp - B), (0, 0))) if Bp != B else x
    n_blocks = Bp // TB

    seed_arr = jnp.asarray([seed], dtype=jnp.int32)
    kernel = functools.partial(_classifier_kernel,
                               drop_prob=float(drop_prob),
                               training=bool(training))

    itemsize = jnp.dtype(x.dtype).itemsize
    cost = pl.CostEstimate(
        flops=2 * Bp * H * LP,
        transcendentals=0,
        bytes_accessed=Bp * H * itemsize + H * LP * itemsize + Bp * LP * itemsize,
    )

    out = pl.pallas_call(
        kernel,
        out_shape=jax.ShapeDtypeStruct((Bp, LP), x.dtype),
        grid_spec=pltpu.PrefetchScalarGridSpec(
            num_scalar_prefetch=1,                      # seed -> SMEM
            grid=(n_blocks,),
            in_specs=[
                pl.BlockSpec((TB, H), lambda i, seed: (i, 0)),   # x tile
                pl.BlockSpec((H, LP), lambda i, seed: (0, 0)),   # W^T (resident)
                pl.BlockSpec((1, LP), lambda i, seed: (0, 0)),   # bias (resident)
            ],
            out_specs=pl.BlockSpec((TB, LP), lambda i, seed: (i, 0)),
        ),
        compiler_params=pltpu.CompilerParams(
            dimension_semantics=("parallel",)),          # 2 TCs on v7x
        cost_estimate=cost,
    )(seed_arr, x_p, w_t, b2d)

    return out[:B, :L]


if __name__ == "__main__":
    # Small shapes implied by the module: pooled DistilBERT hidden state -> labels.
    batch, hidden_size, num_labels = 8, 32, 4
    drop_prob = 0.1

    key = jax.random.PRNGKey(0)
    kx, kw, kb = jax.random.split(key, 3)

    x = jax.random.normal(kx, (batch, hidden_size), dtype=jnp.float32)
    bound = 1.0 / (hidden_size ** 0.5)
    weight = jax.random.uniform(kw, (num_labels, hidden_size),
                                dtype=jnp.float32, minval=-bound, maxval=bound)
    bias = jax.random.uniform(kb, (num_labels,),
                              dtype=jnp.float32, minval=-bound, maxval=bound)

    # Training-mode forward (fused dropout + linear).
    out = distilbert_classifier(x, weight, bias, 0,
                                drop_prob=drop_prob, training=True)
    jax.block_until_ready(out)
    assert out.shape == (batch, num_labels)
    assert bool(jnp.all(jnp.isfinite(out)))

    # Eval-mode (dropout disabled) must match the pure-JAX Linear exactly.
    out_eval = distilbert_classifier(x, weight, bias, 0,
                                     drop_prob=drop_prob, training=False)
    ref_eval = x @ weight.T + bias
    assert jnp.allclose(out_eval, ref_eval, atol=1e-5), "eval mismatch vs reference"

    # p=0 in training mode is also the identity dropout.
    out_p0 = distilbert_classifier(x, weight, bias, 0,
                                   drop_prob=0.0, training=True)
    assert jnp.allclose(out_p0, ref_eval, atol=1e-5), "p=0 mismatch vs reference"

    print("KERNEL_OK")
</pallas_src>

<mosaic_0001>
module attributes {stable_mosaic.version = 11 : i64} {
  func.func @_classifier_kernel(%arg0: i32, %arg1: memref<1xi32, #tpu.memory_space<smem>>, %arg2: memref<8x32xf32, #tpu.memory_space<vmem>>, %arg3: memref<32x128xf32, #tpu.memory_space<vmem>>, %arg4: memref<1x128xf32, #tpu.memory_space<vmem>>, %arg5: memref<8x128xf32, #tpu.memory_space<vmem>>) attributes {dimension_semantics = [#tpu.dimension_semantics<parallel>], iteration_bounds = array<i64: 1>, scalar_prefetch = 1 : i64, scratch_operands = 0 : i64, tpu.core_type = #tpu.core_type<tc>, window_params = [{transform_indices = @transform_0, window_bounds = array<i64: 8, 32>}, {pipeline_mode = #tpu.pipeline_mode<synchronous>, transform_indices = @transform_1, window_bounds = array<i64: 32, 128>}, {pipeline_mode = #tpu.pipeline_mode<synchronous>, transform_indices = @transform_2, window_bounds = array<i64: 1, 128>}, {transform_indices = @transform_3, window_bounds = array<i64: 8, 128>}]} {
    %c0 = arith.constant 0 : index
    %c0_0 = arith.constant 0 : index
    %0 = vector.load %arg2[%c0, %c0_0] : memref<8x32xf32, #tpu.memory_space<vmem>>, vector<8x32xf32>
    %1 = tpu.iota {dimensions = array<i32: 0>} : vector<8x32xi32>
    %2 = tpu.iota {dimensions = array<i32: 1>} : vector<8x32xi32>
    %c8_i32 = arith.constant 8 : i32
    %3 = arith.muli %arg0, %c8_i32 : i32
    %4 = vector.broadcast %3 : i32 to vector<8x32xi32>
    %5 = arith.addi %1, %4 : vector<8x32xi32>
    %c32_i32 = arith.constant 32 : i32
    %6 = vector.broadcast %c32_i32 : i32 to vector<8x32xi32>
    %7 = arith.muli %5, %6 : vector<8x32xi32>
    %8 = arith.addi %7, %2 : vector<8x32xi32>
    %c0_1 = arith.constant 0 : index
    %9 = memref.load %arg1[%c0_1] : memref<1xi32, #tpu.memory_space<smem>>
    %c-1640531527_i32 = arith.constant -1640531527 : i32
    %10 = arith.muli %9, %c-1640531527_i32 : i32
    %11 = vector.broadcast %10 : i32 to vector<8x32xi32>
    %12 = arith.addi %8, %11 : vector<8x32xi32>
    %c16_i32 = arith.constant 16 : i32
    %13 = vector.broadcast %c16_i32 : i32 to vector<8x32xi32>
    %14 = arith.shrui %12, %13 : vector<8x32xi32>
    %15 = arith.xori %12, %14 : vector<8x32xi32>
    %c-2048144789_i32 = arith.constant -2048144789 : i32
    %16 = vector.broadcast %c-2048144789_i32 : i32 to vector<8x32xi32>
    %17 = arith.muli %15, %16 : vector<8x32xi32>
    %c13_i32 = arith.constant 13 : i32
    %18 = vector.broadcast %c13_i32 : i32 to vector<8x32xi32>
    %19 = arith.shrui %17, %18 : vector<8x32xi32>
    %20 = arith.xori %17, %19 : vector<8x32xi32>
    %c-1028477387_i32 = arith.constant -1028477387 : i32
    %21 = vector.broadcast %c-1028477387_i32 : i32 to vector<8x32xi32>
    %22 = arith.muli %20, %21 : vector<8x32xi32>
    %c16_i32_2 = arith.constant 16 : i32
    %23 = vector.broadcast %c16_i32_2 : i32 to vector<8x32xi32>
    %24 = arith.shrui %22, %23 : vector<8x32xi32>
    %25 = arith.xori %22, %24 : vector<8x32xi32>
    %c8_i32_3 = arith.constant 8 : i32
    %26 = vector.broadcast %c8_i32_3 : i32 to vector<8x32xi32>
    %27 = arith.shrui %25, %26 : vector<8x32xi32>
    %c1677722_i32 = arith.constant 1677722 : i32
    %28 = vector.broadcast %c1677722_i32 : i32 to vector<8x32xi32>
    %29 = arith.cmpi sge, %27, %28 : vector<8x32xi32>
    %cst = arith.constant 1.11111116 : f32
    %30 = vector.broadcast %cst : f32 to vector<8x32xf32>
    %31 = arith.mulf %0, %30 : vector<8x32xf32>
    %cst_4 = arith.constant 0.000000e+00 : f32
    %32 = vector.broadcast %cst_4 : f32 to vector<8x32xf32>
    %33 = arith.select %29, %31, %32 : vector<8x32xi1>, vector<8x32xf32>
    %c0_5 = arith.constant 0 : index
    %c0_6 = arith.constant 0 : index
    %34 = vector.load %arg3[%c0_5, %c0_6] : memref<32x128xf32, #tpu.memory_space<vmem>>, vector<32x128xf32>
    %cst_7 = arith.constant dense<0.000000e+00> : vector<8x128xf32>
    %35 = tpu.matmul %33, %34, %cst_7 {dimension_numbers = #tpu.dot_dimension_numbers<[1], [0], [0], [1], [0, 0, 1, 1], [], []>} : vector<8x32xf32>, vector<32x128xf32>, vector<8x128xf32> -> vector<8x128xf32>
    %c0_8 = arith.constant 0 : index
    %c0_9 = arith.constant 0 : index
    %36 = vector.load %arg4[%c0_8, %c0_9] : memref<1x128xf32, #tpu.memory_space<vmem>>, vector<1x128xf32>
    %37 = vector.broadcast %36 : vector<1x128xf32> to vector<8x128xf32>
    %38 = arith.addf %35, %37 : vector<8x128xf32>
    %c0_10 = arith.constant 0 : index
    %c0_11 = arith.constant 0 : index
    %39 = vector.load %arg5[%c0_10, %c0_11] : memref<8x128xf32, #tpu.memory_space<vmem>>, vector<8x128xf32>
    tpu.vector_store %arg5[%c0_10, %c0_11], %38 {strides = array<i32>} : memref<8x128xf32, #tpu.memory_space<vmem>>, vector<8x128xf32>,
    return
  }
  func.func @transform_0(%arg0: i32, %arg1: memref<1xi32, #tpu.memory_space<smem>>) -> (i32, i32) {
    %c0_i32 = arith.constant 0 : i32
    %c0_i32_0 = arith.constant 0 : i32
    return %arg0, %c0_i32 : i32, i32
  }
  func.func @transform_1(%arg0: i32, %arg1: memref<1xi32, #tpu.memory_space<smem>>) -> (i32, i32) {
    %c0_i32 = arith.constant 0 : i32
    %c0_i32_0 = arith.constant 0 : i32
    %c0_i32_1 = arith.constant 0 : i32
    return %c0_i32, %c0_i32_0 : i32, i32
  }
  func.func @transform_2(%arg0: i32, %arg1: memref<1xi32, #tpu.memory_space<smem>>) -> (i32, i32) {
    %c0_i32 = arith.constant 0 : i32
    %c0_i32_0 = arith.constant 0 : i32
    %c0_i32_1 = arith.constant 0 : i32
    return %c0_i32, %c0_i32_0 : i32, i32
  }
  func.func @transform_3(%arg0: i32, %arg1: memref<1xi32, #tpu.memory_space<smem>>) -> (i32, i32) {
    %c0_i32 = arith.constant 0 : i32
    %c0_i32_0 = arith.constant 0 : i32
    return %arg0, %c0_i32 : i32, i32
  }
}

</mosaic_0001>

<llo_original>
// kernel: distilbert_classifier.1
$region0: #{distilbert_classifier.1}
  #allocation0 [shape = 'u32[]', space=smem, size = 0x4, offset = 0x4, fixed_abs, tag = 'smem constant byte address 0x4 - core index']
  #allocation1 [shape = 'u32[144,128]{1,0:T(1,128)}', space=vmem, size = 0x12000, scoped, tag = 'internal scratch']
  #allocation2 [shape = 's32[1]{0}', space=sflag, size = 0x4, scoped, tag = 'scoped memory for distilbert_classifier.1']
  #allocation3 [shape = 's32[1]{0:T(128)S(6)}', space=smem, size = 0x200, scoped, tag = 'prefetched SMEM operand 0']
  %s0 = inlined_call_operand.<no memory space> [shape: s32[1], index: 0, kind: input, shape index: {}]
  %s1 = inlined_call_operand.vmem [shape: f32[8,32], index: 1, kind: input, shape index: {}]
  %s2 = inlined_call_operand.vmem [shape: f32[32,128], index: 2, kind: input, shape index: {}]
  %s3 = inlined_call_operand.vmem [shape: f32[1,128], index: 3, kind: input, shape index: {}]
  %s4 = inlined_call_operand.vmem [shape: f32[8,128], index: 4, kind: output, shape index: {}]
  %s5 = sld [smem:[#allocation0]]
  $region22: #{distilbert_classifier.1} parent=0
    _
  %s7 = ssub.s32 1, %s5
  %s8 = scalar_select 0, %s7, %s5
  %9 = sst [smem:[#allocation3]] %s0
  // Predicated region
  $region2: #{distilbert_classifier.1} parent=0 // pred_check
    _
  $region3: #{distilbert_classifier.1} parent=0 // pred_check_branch
    %11 = sbr.rel (0) target = $region5
  $region4: #{distilbert_classifier.1} parent=0 // pred_region
    _
  $region5: #{distilbert_classifier.1} parent=0 // pred_fallthru
    _
  // Predicated region
  $region6: #{distilbert_classifier.1} parent=0 // pred_check
    _
  $region7: #{distilbert_classifier.1} parent=0 // pred_check_branch
    %13 = sbr.rel (0) target = $region9
  $region8: #{distilbert_classifier.1} parent=0 // pred_region
    _
  $region9: #{distilbert_classifier.1} parent=0 // pred_fallthru
    _
  // Predicated region
  $region10: #{distilbert_classifier.1} parent=0 // pred_check
    _
  $region11: #{distilbert_classifier.1} parent=0 // pred_check_branch
    %15 = sbr.rel (0) target = $region13
  $region12: #{distilbert_classifier.1} parent=0 // pred_region
    _
  $region13: #{distilbert_classifier.1} parent=0 // pred_fallthru
    _
  %v16 = vld [vmem:[%s1] sm:$0xff]
  %v17 = vlaneseq
  %v18 = vshrl.u32 %v17, 7
  %v19 = vlaneseq
  %v20 = vand.u32 %v19, 127
  %s21 = smul.u32 0, 8
  %v22 = vstv %s21
  %v23 = vadd.s32 %v18, %v22
  %v24 = vmul.u32 %v23, 32
  %v25 = vadd.s32 %v24, %v20
  %s26 = sld [smem:[#allocation3]]
  %s27 = smul.u32 %s26, 2654435769
  %v28 = vstv %s27
  %v29 = vadd.s32 %v25, %v28
  %v30 = vshrl.u32 %v29, 16
  %v31 = vxor.u32 %v29, %v30
  %v32 = vmul.u32 %v31, 2246822507
  %v33 = vshrl.u32 %v32, 13
  %v34 = vxor.u32 %v32, %v33
  %v35 = vmul.u32 %v34, 3266489909
  %v36 = vshrl.u32 %v35, 16
  %v37 = vxor.u32 %v35, %v36
  %v38 = vshrl.u32 %v37, 8
  %vm39 = vcmp.ge.s32.totalorder %v38, 1677722
  %v40 = vmul.f32 %v16, 1.1111112
  %v41 = vsel %vm39, %v40, 0.0
  %v42 = vld [vmem:[%s2] sm:$0xff]
  %v43 = vld [vmem:[%s2 + $0x8] sm:$0xff]
  %v44 = vld [vmem:[%s2 + $0x10] sm:$0xff]
  %v45 = vld [vmem:[%s2 + $0x18] sm:$0xff]
  %v46 = vld [vmem:[%s3] sm:$0x1]
  %v48 = vlaneseq
  %v49 = vshrl.u32 %v48, 7
  %v50 = vsub.s32 0, %v49
  %v51 = vrot.slane %v46, %v50
  %vm53 = vcmask 261120
  %v55 = vsel %vm53, %v41, 0
  %57 = vmatprep.subr.mxu0 0.0
  %58 = vmatpush1.msra.mxu0 %v42
  %59 = vmatprep.subr.mxu0 0.0
  %60 = vmatpush1.msra.mxu0 %v43
  %61 = vmatprep.subr.mxu0 0.0
  %62 = vmatpush1.msra.mxu0 %v44
  %63 = vmatprep.subr.mxu0 0.0
  %64 = vmatpush1.msra.mxu0 %v45
  %65 = vmatprep.subr.mxu0 0.0
  %66 = vmatpush1.msra.mxu0 0.0
  %67 = vmatprep.subr.mxu0 0.0
  %68 = vmatpush1.msra.mxu0 0.0
  %69 = vmatprep.subr.mxu0 0.0
  %70 = vmatpush1.msra.mxu0 0.0
  %71 = vmatprep.subr.mxu0 0.0
  %72 = vmatpush1.msra.mxu0 0.0
  %73 = vmatprep.subr.mxu0 0.0
  %74 = vmatpush1.msra.mxu0 0.0
  %75 = vmatprep.subr.mxu0 0.0
  %76 = vmatpush1.msra.mxu0 0.0
  %77 = vmatprep.subr.mxu0 0.0
  %78 = vmatpush1.msra.mxu0 0.0
  %79 = vmatprep.subr.mxu0 0.0
  %80 = vmatpush1.msra.mxu0 0.0
  %81 = vmatprep.subr.mxu0 0.0
  %82 = vmatpush1.msra.mxu0 0.0
  %83 = vmatprep.subr.mxu0 0.0
  %84 = vmatpush1.msra.mxu0 0.0
  %85 = vmatprep.subr.mxu0 0.0
  %86 = vmatpush1.msra.mxu0 0.0
  %87 = vmatprep.subr.mxu0 0.0
  %88 = vmatpush1.msra.mxu0 0.0
  %89 = vmatprep.subr.mxu0 0.0
  %90 = vmatpush1.msra.mxu0 0.0
  %91 = vmatprep.subr.mxu0 0.0
  %92 = vmatpush1.msra.mxu0 0.0
  %93 = vmatprep.subr.mxu0 0.0
  %94 = vmatpush1.msra.mxu0 0.0
  %95 = vmatprep.subr.mxu0 0.0
  %96 = vmatpush1.msra.mxu0 0.0
  %97 = vmatprep.subr.mxu0 0.0
  %98 = vmatpush1.msra.mxu0 0.0
  %99 = vmatprep.subr.mxu0 0.0
  %100 = vmatpush1.msra.mxu0 0.0
  %101 = vmatprep.subr.mxu0 0.0
  %102 = vmatpush1.msra.mxu0 0.0
  %103 = vmatprep.subr.mxu0 0.0
  %104 = vmatpush1.msra.mxu0 0.0
  %105 = vmatprep.subr.mxu0 0.0
  %106 = vmatpush1.msra.mxu0 0.0
  %107 = vmatprep.subr.mxu0 0.0
  %108 = vmatpush1.msra.mxu0 0.0
  %109 = vmatprep.subr.mxu0 0.0
  %110 = vmatpush1.msra.mxu0 0.0
  %111 = vmatprep.subr.mxu0 0.0
  %112 = vmatpush1.msra.mxu0 0.0
  %113 = vmatprep.subr.mxu0 0.0
  %114 = vmatpush1.msra.mxu0 0.0
  %115 = vmatprep.subr.mxu0 0.0
  %116 = vmatpush1.msra.mxu0 0.0
  %117 = vmatprep.subr.mxu0 0.0
  %118 = vmatpush1.msra.mxu0 0.0
  %119 = vmatprep.subr.mxu0 0.0
  %120 = vmatpush1.msra.mxu0 0.0
  %121 = vmatprep.mubr.f32.mxu0 0.0
  %122 = vmatmul.mubr.f32.gmra.mrb[0].mxu0 %v55
  %v123 = vpop.f32.mrb[0].mxu0
  %v124 = vadd.f32 %v51, %v123
  %v125 = vpop.f32.mrb[0].mxu0
  %126 = vdwg.mxu0
  %127 = vst [vmem:[%s4] sm:$0xff] %v124
  // Predicated region
  $region14: #{distilbert_classifier.1} parent=0 // pred_check
    _
  $region15: #{distilbert_classifier.1} parent=0 // pred_check_branch
    %129 = sbr.rel (0) target = $region17
  $region16: #{distilbert_classifier.1} parent=0 // pred_region
    _
  $region17: #{distilbert_classifier.1} parent=0 // pred_fallthru
    _
  // Predicated region
  $region18: #{distilbert_classifier.1} parent=0 // pred_check
    _
  $region19: #{distilbert_classifier.1} parent=0 // pred_check_branch
    %131 = sbr.rel (0) target = $region21
  $region20: #{distilbert_classifier.1} parent=0 // pred_region
    _
  $region21: #{distilbert_classifier.1} parent=0 // pred_fallthru
    _

</llo_original>
